<compile_context>
chip_gen: v6e
topology: v6e:2x2x1
jax: 0.10.0
libtpu: 0.0.40
codegen_flags: <defaults>
</compile_context>

<pallas_src>
import jax
import jax.numpy as jnp
from jax.experimental import pallas as pl
from jax.experimental.pallas import tpu as pltpu


def _round_up(x: int, m: int) -> int:
    return ((x + m - 1) // m) * m


def _tc_per_chip() -> int:
    """Best-effort TensorCores-per-device count (dual-TC parts: v4/v5p/v7x)."""
    try:
        kind = jax.devices()[0].device_kind.lower()
    except Exception:
        return 1
    return 2 if any(tag in kind for tag in ("v4", "v5p", "v7")) else 1


def _vmem_budget_bytes() -> int:
    """~50% of per-core VMEM; conservative 32 MiB fallback (v7x-safe)."""
    try:
        cap = int(pltpu.get_tpu_info().vmem_capacity_bytes)
    except Exception:
        cap = 64 << 20  # assume the tightest generation (v7x: 64 MiB / TC)
    return cap // 2


def phoneme_embed_kernel(idx_ref, tab_ref, out_ref):
    # idx_ref : (rt, 3)      int32 flattened (batch*seq) rows for this step
    # tab_ref : (V, E_pad)   embedding table (VMEM-resident, E_pad % 128 == 0)
    # out_ref : (rt, 3*E_pad) output, component order [onset | rhyme | tone]
    idx = idx_ref[...]                      # (rt, 3)
    tab = tab_ref[...]                      # (V, E_pad)
    rt = idx.shape[0]
    V, E = tab.shape

    # Stack the three component columns along the row (sublane) axis so a
    # single (3*rt, V) one-hot feeds ONE fused MXU matmul (instead of three
    # tiny M=rt matmuls), with a single iota / compare / cast.
    # NOTE: the (rt, 3) idx block is lane-sparse; a (3, rt) lane-dense layout
    # would save a small strided DMA + two lane-shifts per step (low priority).
    stacked = jnp.concatenate(
        [idx[:, 0:1], idx[:, 1:2], idx[:, 2:3]], axis=0)            # (3*rt, 1)
    vocab_iota = jax.lax.broadcasted_iota(jnp.int32, (3 * rt, V), 1)
    onehot = (stacked == vocab_iota).astype(tab.dtype)              # (3*rt, V)

    # One MXU push. With an f32 table this row-select is exact (one 1.0/row).
    emb = jnp.dot(onehot, tab, preferred_element_type=jnp.float32)  # (3*rt, E)

    # Scatter the three row groups into the concatenated output columns.
    # rt is a multiple of 8 and E a multiple of 128 -> full-width unmasked vst.
    for c in range(3):
        out_ref[:, c * E:(c + 1) * E] = (
            emb[c * rt:(c + 1) * rt].astype(out_ref.dtype))


def phoneme_embedding(phoneme_tensor: jax.Array, table: jax.Array, *,
                      row_tile: int = 1024, out_dtype=None,
                      allow_bf16_compute: bool = False) -> jax.Array:
    """phoneme_tensor: (B, S, 3) int; table: (V, E) f32 -> (B, S, 3*E).

    out_dtype defaults to table.dtype (f32 -> bit-exact vs PyTorch); pass
    jnp.bfloat16 to halve output HBM writeback if the consumer tolerates it.
    allow_bf16_compute=True additionally runs the one-hot matmul in bf16
    (fewer MXU passes) at the cost of bf16-rounded embedding values.
    """
    B, S, C = phoneme_tensor.shape
    assert C == 3, "phoneme_tensor must have 3 components (onset, rhyme, tone)"
    V, E = table.shape
    out_dtype = jnp.dtype(table.dtype if out_dtype is None else out_dtype)

    # Lane-align the embedding width so the kernel's three column-group stores
    # stay unmasked full-width vst (offsets E, 2E must be multiples of 128).
    E_pad = _round_up(E, 128)
    if E_pad != E:
        table = jnp.pad(table, ((0, 0), (0, E_pad - E)))
    if allow_bf16_compute:
        table = table.astype(jnp.bfloat16)

    tab_itemsize = jnp.dtype(table.dtype).itemsize
    out_itemsize = out_dtype.itemsize
    n_tc = _tc_per_chip()
    budget = _vmem_budget_bytes()

    R = B * S
    idx = phoneme_tensor.reshape(R, 3).astype(jnp.int32)

    # Single-buffer the (resident, constant-index_map) table once its second
    # pipeline buffer would actually cost meaningful VMEM.
    table_bytes = V * E_pad * tab_itemsize
    table_single_buffer = table_bytes > (4 << 20)
    n_tab_buf = 1 if table_single_buffer else 2

    def vmem_est(rt_: int) -> int:
        return (n_tab_buf * table_bytes                         # table buffer(s)
                + 2 * rt_ * 3 * E_pad * out_itemsize            # out (dbl-buf)
                + 2 * rt_ * 128 * 4                             # idx (lane-pad)
                + 3 * rt_ * _round_up(V, 128) * tab_itemsize    # one-hot
                + 3 * rt_ * E_pad * 4)                          # f32 matmul acc

    # ---- row-tile selection (generation aware) -----------------------------
    rt = max(8, min(_round_up(row_tile, 8), _round_up(R, 8)))
    if n_tc == 2 and R >= 16:
        # Keep >= 2 grid steps so the single "parallel" axis feeds both TCs.
        rt = min(rt, max(8, _round_up(pl.cdiv(R, 2), 8)))
    # Never request VMEM below the real need: shrink rt until it fits instead.
    while rt > 8 and vmem_est(rt) > budget:
        rt = max(8, _round_up(rt // 2, 8))

    grid_r = pl.cdiv(R, rt)
    if n_tc == 2 and grid_r > 2 and grid_r % 2 == 1:
        # Even the grid over the two TensorCores (cheap load-balance win).
        rt2 = max(8, _round_up(pl.cdiv(R, grid_r + 1), 8))
        if pl.cdiv(R, rt2) % 2 == 0 and vmem_est(rt2) <= budget:
            rt = rt2
            grid_r = pl.cdiv(R, rt)

    est = vmem_est(rt)
    vmem_limit = int(min(budget, max(int(est * 1.5), 32 << 20)))
    vmem_limit = max(vmem_limit, est)   # never clamp below the requirement

    # Scheduling hint for XLA.
    cost = pl.CostEstimate(
        flops=2 * 3 * R * V * E_pad,
        transcendentals=0,
        bytes_accessed=(R * 3 * 4                       # indices
                        + table_bytes                   # table
                        + R * 3 * E_pad * out_itemsize))  # output

    tab_spec_kwargs = {}
    if table_single_buffer:
        tab_spec_kwargs["pipeline_mode"] = pl.Buffered(1)

    out_flat = pl.pallas_call(
        phoneme_embed_kernel,
        out_shape=jax.ShapeDtypeStruct((R, 3 * E_pad), out_dtype),
        grid_spec=pltpu.PrefetchScalarGridSpec(
            num_scalar_prefetch=0,
            grid=(grid_r,),
            in_specs=[
                pl.BlockSpec((rt, 3), lambda r: (r, 0)),
                # Constant index_map -> table stays resident across all steps.
                pl.BlockSpec((V, E_pad), lambda r: (0, 0), **tab_spec_kwargs),
            ],
            out_specs=pl.BlockSpec((rt, 3 * E_pad), lambda r: (r, 0)),
        ),
        compiler_params=pltpu.CompilerParams(
            dimension_semantics=("parallel",),
            vmem_limit_bytes=vmem_limit,
        ),
        cost_estimate=cost,
    )(idx, table)

    if E_pad != E:
        out_flat = out_flat.reshape(R, 3, E_pad)[:, :, :E]
    return out_flat.reshape(B, S, 3 * E)


if __name__ == "__main__":
    key = jax.random.PRNGKey(0)
    k_tab, k_idx = jax.random.split(key)

    vocab_size = 32
    embed_dim = 256   # module default; multiple of 128 -> lane-aligned stores
    B, S = 2, 8

    # Deterministic synthetic parameters (nn.Embedding weight ~ N(0, 1)).
    table = jax.random.normal(k_tab, (vocab_size, embed_dim), dtype=jnp.float32)
    phonemes = jax.random.randint(k_idx, (B, S, 3), 0, vocab_size, dtype=jnp.int32)

    out = phoneme_embedding(phonemes, table)
    out = jax.block_until_ready(out)

    # Reference (plain JAX gather + concat, matches torch semantics).
    ref = jnp.concatenate(
        [table[phonemes[:, :, 0]], table[phonemes[:, :, 1]], table[phonemes[:, :, 2]]],
        axis=-1,
    )
    assert out.shape == (B, S, 3 * embed_dim)
    assert jnp.allclose(out, ref, atol=1e-6), "mismatch vs reference"

    print("KERNEL_OK")
</pallas_src>

<mosaic_0001>
module attributes {stable_mosaic.version = 11 : i64} {
  func.func @phoneme_embed_kernel(%arg0: i32, %arg1: memref<16x3xi32, #tpu.memory_space<vmem>>, %arg2: memref<32x256xf32, #tpu.memory_space<vmem>>, %arg3: memref<16x768xf32, #tpu.memory_space<vmem>>) attributes {dimension_semantics = [#tpu.dimension_semantics<parallel>], iteration_bounds = array<i64: 1>, scalar_prefetch = 0 : i64, scratch_operands = 0 : i64, tpu.core_type = #tpu.core_type<tc>, window_params = [{transform_indices = @transform_0, window_bounds = array<i64: 16, 3>}, {pipeline_mode = #tpu.pipeline_mode<synchronous>, transform_indices = @transform_1, window_bounds = array<i64: 32, 256>}, {transform_indices = @transform_2, window_bounds = array<i64: 16, 768>}]} {
    %c0 = arith.constant 0 : index
    %c0_0 = arith.constant 0 : index
    %0 = vector.load %arg1[%c0, %c0_0] : memref<16x3xi32, #tpu.memory_space<vmem>>, vector<16x3xi32>
    %c0_1 = arith.constant 0 : index
    %c0_2 = arith.constant 0 : index
    %1 = vector.load %arg2[%c0_1, %c0_2] : memref<32x256xf32, #tpu.memory_space<vmem>>, vector<32x256xf32>
    %2 = vector.extract_strided_slice %0 {offsets = [0, 0], sizes = [16, 1], strides = [1, 1]} : vector<16x3xi32> to vector<16x1xi32>
    %3 = vector.extract_strided_slice %0 {offsets = [0, 1], sizes = [16, 1], strides = [1, 1]} : vector<16x3xi32> to vector<16x1xi32>
    %4 = vector.extract_strided_slice %0 {offsets = [0, 2], sizes = [16, 1], strides = [1, 1]} : vector<16x3xi32> to vector<16x1xi32>
    %5 = tpu.concatenate %2, %3, %4 in 0 : vector<16x1xi32>, vector<16x1xi32>, vector<16x1xi32> -> vector<48x1xi32>
    %6 = tpu.iota {dimensions = array<i32: 1>} : vector<48x32xi32>
    %7 = vector.broadcast %5 : vector<48x1xi32> to vector<48x32xi32>
    %8 = arith.cmpi eq, %7, %6 : vector<48x32xi32>
    %9 = arith.extui %8 : vector<48x32xi1> to vector<48x32xi32>
    %10 = arith.sitofp %9 : vector<48x32xi32> to vector<48x32xf32>
    %cst = arith.constant dense<0.000000e+00> : vector<48x256xf32>
    %11 = tpu.matmul %10, %1, %cst {dimension_numbers = #tpu.dot_dimension_numbers<[1], [0], [0], [1], [0, 0, 1, 1], [], []>} : vector<48x32xf32>, vector<32x256xf32>, vector<48x256xf32> -> vector<48x256xf32>
    %12 = vector.extract_strided_slice %11 {offsets = [0, 0], sizes = [16, 256], strides = [1, 1]} : vector<48x256xf32> to vector<16x256xf32>
    %c0_3 = arith.constant 0 : index
    %c0_4 = arith.constant 0 : index
    %13 = vector.load %arg3[%c0_3, %c0_4] : memref<16x768xf32, #tpu.memory_space<vmem>>, vector<16x256xf32>
    tpu.vector_store %arg3[%c0_3, %c0_4], %12 {strides = array<i32>} : memref<16x768xf32, #tpu.memory_space<vmem>>, vector<16x256xf32>,
    %14 = vector.extract_strided_slice %11 {offsets = [16, 0], sizes = [16, 256], strides = [1, 1]} : vector<48x256xf32> to vector<16x256xf32>
    %c0_5 = arith.constant 0 : index
    %c256 = arith.constant 256 : index
    %15 = vector.load %arg3[%c0_5, %c256] : memref<16x768xf32, #tpu.memory_space<vmem>>, vector<16x256xf32>
    tpu.vector_store %arg3[%c0_5, %c256], %14 {strides = array<i32>} : memref<16x768xf32, #tpu.memory_space<vmem>>, vector<16x256xf32>,
    %16 = vector.extract_strided_slice %11 {offsets = [32, 0], sizes = [16, 256], strides = [1, 1]} : vector<48x256xf32> to vector<16x256xf32>
    %c0_6 = arith.constant 0 : index
    %c512 = arith.constant 512 : index
    %17 = vector.load %arg3[%c0_6, %c512] : memref<16x768xf32, #tpu.memory_space<vmem>>, vector<16x256xf32>
    tpu.vector_store %arg3[%c0_6, %c512], %16 {strides = array<i32>} : memref<16x768xf32, #tpu.memory_space<vmem>>, vector<16x256xf32>,
    return
  }
  func.func @transform_0(%arg0: i32) -> (i32, i32) {
    %c0_i32 = arith.constant 0 : i32
    %c0_i32_0 = arith.constant 0 : i32
    return %arg0, %c0_i32 : i32, i32
  }
  func.func @transform_1(%arg0: i32) -> (i32, i32) {
    %c0_i32 = arith.constant 0 : i32
    %c0_i32_0 = arith.constant 0 : i32
    %c0_i32_1 = arith.constant 0 : i32
    return %c0_i32, %c0_i32_0 : i32, i32
  }
  func.func @transform_2(%arg0: i32) -> (i32, i32) {
    %c0_i32 = arith.constant 0 : i32
    %c0_i32_0 = arith.constant 0 : i32
    return %arg0, %c0_i32 : i32, i32
  }
}

</mosaic_0001>

<llo_original>
// kernel: tpu_custom_call.1
$region0: #{tpu_custom_call.1}
  #allocation0 [shape = 'u32[]', space=smem, size = 0x4, offset = 0x4, fixed_abs, tag = 'smem constant byte address 0x4 - core index']
  #allocation1 [shape = 'u32[144,128]{1,0:T(1,128)}', space=vmem, size = 0x12000, scoped, tag = 'internal scratch']
  %s0 = inlined_call_operand.vmem [shape: s32[16,3], index: 0, kind: input, shape index: {}]
  %s1 = inlined_call_operand.hbm [shape: f32[32,256], index: 1, kind: input, shape index: {}]
  %s2 = inlined_call_operand.hbm [shape: f32[16,768], index: 2, kind: output, shape index: {}]
  %s3 = sld [smem:[#allocation0]]
  $region22: #{tpu_custom_call.1} parent=0
    _
  %s5 = ssub.s32 1, %s3
  %s6 = scalar_select 0, %s5, %s3
  $region1: #{tpu_custom_call.1} parent=0
    #allocation2 [shape = 'u8[32768]{0}', space=vmem, size = 0x8000, scoped, tag = 'input window, operand 1, single buffered']
    #allocation3 [shape = 's32[1]{0}', space=sflag, size = 0x4, scoped, tag = 'scoped memory for tpu_custom_call.1']
    #allocation4 [shape = 's32[1]{0}', space=sflag, size = 0x4, scoped, tag = 'scoped memory for tpu_custom_call.1']
    #allocation5 [shape = 'u8[49152]{0}', space=vmem, size = 0xc000, scoped, tag = 'output window, operand 0, single buffered']
    %7 = vsyncpa [#allocation3], 0
    %8 = vsyncpa [#allocation4], 0
    // Predicated region
    $region2: #{tpu_custom_call.1} parent=1 // pred_check
      _
    $region3: #{tpu_custom_call.1} parent=1 // pred_check_branch
      %10 = sbr.rel (0) target = $region5
    $region4: #{tpu_custom_call.1} parent=1 // pred_region
      _
    $region5: #{tpu_custom_call.1} parent=1 // pred_fallthru
      _
    // Predicated region
    $region6: #{tpu_custom_call.1} parent=1 // pred_check
      _
    $region7: #{tpu_custom_call.1} parent=1 // pred_check_branch
      %12 = sbr.rel (0) target = $region9
    $region8: #{tpu_custom_call.1} parent=1 // pred_region
      %s14 = ssub.s32 1024, 1024
      %15 = vsyncadd [#allocation3], %s14
      %s16 = sshll.u32 [#allocation2], 4
      %s17 = int_to_ptr.vmem [resolvable:$true] %s16
      %22 = dma.hbm_to_vmem [thread:$0]  %s1, 1024, %s17, [#allocation3], 256, 256, 16
    $region9: #{tpu_custom_call.1} parent=1 // pred_fallthru
      _
    // Predicated region
    $region10: #{tpu_custom_call.1} parent=1 // pred_check
      _
    $region11: #{tpu_custom_call.1} parent=1 // pred_check_branch
      %24 = sbr.rel (0) target = $region13
    $region12: #{tpu_custom_call.1} parent=1 // pred_region
      %25 = dma.done [#allocation3], 1024
    $region13: #{tpu_custom_call.1} parent=1 // pred_fallthru
      _
    %v26 = vld [vmem:[%s0] sm:$0xff]
    %v27 = vld [vmem:[%s0 + $0x8] sm:$0xff]
    %v28 = vld [vmem:[#allocation2] sm:$0xff]
    %v29 = vld [vmem:[#allocation2 + $0x8] sm:$0xff]
    %v30 = vld [vmem:[#allocation2 + $0x10] sm:$0xff]
    %v31 = vld [vmem:[#allocation2 + $0x18] sm:$0xff]
    %v32 = vld [vmem:[#allocation2 + $0x20] sm:$0xff]
    %v33 = vld [vmem:[#allocation2 + $0x28] sm:$0xff]
    %v34 = vld [vmem:[#allocation2 + $0x30] sm:$0xff]
    %v35 = vld [vmem:[#allocation2 + $0x38] sm:$0xff]
    %36 = vrot.lane.b32.xlu0 %v26, 127
    %v37 = vpop.permute.xlu0 %36
    %38 = vrot.lane.b32.xlu0 %v27, 127
    %v39 = vpop.permute.xlu0 %38
    %40 = vrot.lane.b32.xlu0 %v26, 126
    %v41 = vpop.permute.xlu0 %40
    %42 = vrot.lane.b32.xlu0 %v27, 126
    %v43 = vpop.permute.xlu0 %42
    %v44 = vlaneseq
    %v45 = vand.u32 %v44, 127
    %46 = vset.pattern.permute.xlu0 0
    %47 = vperm.xlu0 %46, %v26
    %v48 = vpop.permute.xlu0 %47
    %49 = vset.pattern.permute.xlu0 0
    %50 = vperm.xlu0 %49, %v27
    %v51 = vpop.permute.xlu0 %50
    %52 = vset.pattern.permute.xlu0 0
    %53 = vperm.xlu0 %52, %v37
    %v54 = vpop.permute.xlu0 %53
    %55 = vset.pattern.permute.xlu0 0
    %56 = vperm.xlu0 %55, %v39
    %v57 = vpop.permute.xlu0 %56
    %58 = vset.pattern.permute.xlu0 0
    %59 = vperm.xlu0 %58, %v41
    %v60 = vpop.permute.xlu0 %59
    %61 = vset.pattern.permute.xlu0 0
    %62 = vperm.xlu0 %61, %v43
    %v63 = vpop.permute.xlu0 %62
    %vm64 = vcmp.eq.s32.totalorder %v48, %v45
    %vm65 = vcmp.eq.s32.totalorder %v51, %v45
    %vm66 = vcmp.eq.s32.totalorder %v54, %v45
    %vm67 = vcmp.eq.s32.totalorder %v57, %v45
    %vm68 = vcmp.eq.s32.totalorder %v60, %v45
    %vm69 = vcmp.eq.s32.totalorder %v63, %v45
    %v70 = vsel %vm64, 1, 0
    %v71 = vsel %vm65, 1, 0
    %v72 = vsel %vm66, 1, 0
    %v73 = vsel %vm67, 1, 0
    %v74 = vsel %vm68, 1, 0
    %v75 = vsel %vm69, 1, 0
    %v76 = vcvt.s32.f32 %v70
    %v77 = vcvt.s32.f32 %v71
    %v78 = vcvt.s32.f32 %v72
    %v79 = vcvt.s32.f32 %v73
    %v80 = vcvt.s32.f32 %v74
    %v81 = vcvt.s32.f32 %v75
    %vm82 = vcmask 261120
    %v84 = vsel %vm82, %v76, 0
    %v87 = vsel %vm82, %v77, 0
    %v90 = vsel %vm82, %v78, 0
    %v93 = vsel %vm82, %v79, 0
    %v96 = vsel %vm82, %v80, 0
    %v99 = vsel %vm82, %v81, 0
    %101 = vmatprep.subr.mxu0 0.0
    %102 = vmatpush1.msra.mxu0 0.0
    %103 = vmatprep.subr.mxu0 0.0
    %104 = vmatpush1.msra.mxu0 0.0
    %105 = vmatprep.subr.mxu0 0.0
    %106 = vmatpush1.msra.mxu0 0.0
    %107 = vmatprep.subr.mxu0 0.0
    %108 = vmatpush1.msra.mxu0 0.0
    %109 = vmatprep.subr.mxu0 0.0
    %110 = vmatpush1.msra.mxu0 0.0
    %111 = vmatprep.subr.mxu0 0.0
    %112 = vmatpush1.msra.mxu0 0.0
    %113 = vmatprep.subr.mxu0 0.0
    %114 = vmatpush1.msra.mxu0 0.0
    %115 = vmatprep.subr.mxu0 0.0
    %116 = vmatpush1.msra.mxu0 0.0
    %117 = vmatprep.subr.mxu0 0.0
    %118 = vmatpush1.msra.mxu0 0.0
    %119 = vmatprep.subr.mxu0 0.0
    %120 = vmatpush1.msra.mxu0 0.0
    %121 = vmatprep.subr.mxu0 0.0
    %122 = vmatpush1.msra.mxu0 0.0
    %123 = vmatprep.subr.mxu0 0.0
    %124 = vmatpush1.msra.mxu0 0.0
    %125 = vmatprep.subr.mxu0 %v35
    %126 = vmatpush1.msra.mxu0 %v34
    %127 = vmatprep.subr.mxu0 %v33
    %128 = vmatpush1.msra.mxu0 %v32
    %129 = vmatprep.subr.mxu0 %v31
    %130 = vmatpush1.msra.mxu0 %v30
    %131 = vmatprep.subr.mxu0 %v29
    %132 = vmatpush1.msra.mxu0 %v28
    %133 = vmatprep.subr.mxu0 0.0
    %134 = vmatpush2.msra.mxu0 0.0
    %135 = vmatprep.subr.mxu0 0.0
    %136 = vmatpush2.msra.mxu0 0.0
    %137 = vmatprep.subr.mxu0 0.0
    %138 = vmatpush2.msra.mxu0 0.0
    %139 = vmatprep.subr.mxu0 0.0
    %140 = vmatpush2.msra.mxu0 0.0
    %141 = vmatprep.subr.mxu0 0.0
    %142 = vmatpush2.msra.mxu0 0.0
    %143 = vmatprep.subr.mxu0 0.0
    %144 = vmatpush2.msra.mxu0 0.0
    %145 = vmatprep.subr.mxu0 0.0
    %146 = vmatpush2.msra.mxu0 0.0
    %147 = vmatprep.subr.mxu0 0.0
    %148 = vmatpush2.msra.mxu0 0.0
    %149 = vmatprep.subr.mxu0 0.0
    %150 = vmatpush2.msra.mxu0 0.0
    %151 = vmatprep.subr.mxu0 0.0
    %152 = vmatpush2.msra.mxu0 0.0
    %153 = vmatprep.subr.mxu0 0.0
    %154 = vmatpush2.msra.mxu0 0.0
    %155 = vmatprep.subr.mxu0 0.0
    %156 = vmatpush2.msra.mxu0 0.0
    %157 = vmatprep.subr.mxu0 0.0
    %158 = vmatpush2.msra.mxu0 0.0
    %159 = vmatprep.subr.mxu0 0.0
    %160 = vmatpush2.msra.mxu0 0.0
    %161 = vmatprep.subr.mxu0 0.0
    %162 = vmatpush2.msra.mxu0 0.0
    %163 = vmatprep.subr.mxu0 0.0
    %164 = vmatpush2.msra.mxu0 0.0
    %165 = vmatprep.mubr.f32.mxu0 0.0
    %166 = vmatmul.mubr.f32.gmra.mxu0 %v84
    %v167 = vpop.f32.mrf.mxu0
    %v168 = vadd.f32 0.0, %v167
    %v169 = vpop.f32.mrf.mxu0
    %v170 = vadd.f32 0.0, %v169
    %171 = vmatprep.mubr.f32.mxu0 0.0
    %172 = vmatmul.mubr.f32.gmra.mxu0 %v87
    %v173 = vpop.f32.mrf.mxu0
    %v174 = vadd.f32 0.0, %v173
    %v175 = vpop.f32.mrf.mxu0
    %v176 = vadd.f32 0.0, %v175
    %177 = vmatprep.mubr.f32.mxu0 0.0
    %178 = vmatmul.mubr.f32.gmra.mxu0 %v90
    %v179 = vpop.f32.mrf.mxu0
    %v180 = vadd.f32 0.0, %v179
    %v181 = vpop.f32.mrf.mxu0
    %v182 = vadd.f32 0.0, %v181
    %183 = vmatprep.mubr.f32.mxu0 0.0
    %184 = vmatmul.mubr.f32.gmra.mxu0 %v93
    %v185 = vpop.f32.mrf.mxu0
    %v186 = vadd.f32 0.0, %v185
    %v187 = vpop.f32.mrf.mxu0
    %v188 = vadd.f32 0.0, %v187
    %189 = vmatprep.mubr.f32.mxu0 0.0
    %190 = vmatmul.mubr.f32.gmra.mxu0 %v96
    %v191 = vpop.f32.mrf.mxu0
    %v192 = vadd.f32 0.0, %v191
    %v193 = vpop.f32.mrf.mxu0
    %v194 = vadd.f32 0.0, %v193
    %195 = vmatprep.mubr.f32.mxu0 0.0
    %196 = vmatmul.mubr.f32.gmra.mxu0 %v99
    %v197 = vpop.f32.mrf.mxu0
    %v198 = vadd.f32 0.0, %v197
    %v199 = vpop.f32.mrf.mxu0
    %v200 = vadd.f32 0.0, %v199
    %201 = vdwg.mxu0
    %202 = vst [vmem:[#allocation5] sm:$0xff] %v168
    %203 = vst [vmem:[#allocation5 + $0x8] sm:$0xff] %v170
    %204 = vst [vmem:[#allocation5 + $0x30] sm:$0xff] %v174
    %205 = vst [vmem:[#allocation5 + $0x38] sm:$0xff] %v176
    %206 = vst [vmem:[#allocation5 + $0x10] sm:$0xff] %v180
    %207 = vst [vmem:[#allocation5 + $0x18] sm:$0xff] %v182
    %208 = vst [vmem:[#allocation5 + $0x40] sm:$0xff] %v186
    %209 = vst [vmem:[#allocation5 + $0x48] sm:$0xff] %v188
    %210 = vst [vmem:[#allocation5 + $0x20] sm:$0xff] %v192
    %211 = vst [vmem:[#allocation5 + $0x28] sm:$0xff] %v194
    %212 = vst [vmem:[#allocation5 + $0x50] sm:$0xff] %v198
    %213 = vst [vmem:[#allocation5 + $0x58] sm:$0xff] %v200
    // Predicated region
    $region14: #{tpu_custom_call.1} parent=1 // pred_check
      _
    $region15: #{tpu_custom_call.1} parent=1 // pred_check_branch
      %215 = sbr.rel (0) target = $region17
    $region16: #{tpu_custom_call.1} parent=1 // pred_region
      %s217 = ssub.s32 1536, 1536
      %218 = vsyncadd [#allocation4], %s217
      %s219 = sshll.u32 [#allocation5], 4
      %s220 = int_to_ptr.vmem [resolvable:$true] %s219
      %225 = dma.vmem_to_hbm [thread:$0]  %s220, 1536, %s2, [#allocation4], 768, 768, 48
    $region17: #{tpu_custom_call.1} parent=1 // pred_fallthru
      _
    // Predicated region
    $region18: #{tpu_custom_call.1} parent=1 // pred_check
      _
    $region19: #{tpu_custom_call.1} parent=1 // pred_check_branch
      %227 = sbr.rel (0) target = $region21
    $region20: #{tpu_custom_call.1} parent=1 // pred_region
      %228 = dma.done [#allocation4], 1536
    $region21: #{tpu_custom_call.1} parent=1 // pred_fallthru
      _
    %229 = vsyncpa [#allocation3], 1
    %230 = vsyncpa [#allocation4], 1

</llo_original>
